<compile_context>
chip_gen: v6e
topology: v6e:2x2x1
jax: 0.10.0
libtpu: 0.0.40
codegen_flags: <defaults>
</compile_context>

<pallas_src>
import numpy as np
import jax
import jax.numpy as jnp
from jax import lax
from jax.experimental import pallas as pl
from jax.experimental.pallas import tpu as pltpu

EMB_WEIGHT_UNIFORM_INIT_BOUND = 0.000316


def _emb_bag_kernel(starts_ref, ends_ref, onehot_ref, w_ref, o_ref):
    """One grid step == one embedding table.

    starts_ref : VMEM (1, B, 1)   int32   bag start offsets for this table
    ends_ref   : VMEM (1, B, 1)   int32   bag end offsets for this table
    onehot_ref : VMEM (E, L_pad)  bf16    table-invariant one-hot (resident)
    w_ref      : VMEM (1, E, D)   float32 this table's weights
    o_ref      : VMEM (B, D)      float32 this table's slice of the (B, T*D) out
    """
    B, D = o_ref.shape
    E, L = onehot_ref.shape

    starts = starts_ref[0]                                   # (B, 1) int32
    ends = ends_ref[0]                                       # (B, 1) int32

    # bag[b, i] = 1 iff index position i belongs to bag (t, b).  Single
    # vectorized compare; padded positions (i >= total) lie outside every
    # [start, end) range and are masked to 0.
    pos = lax.broadcasted_iota(jnp.int32, (B, L), 1)         # (B, L)
    bag = ((pos >= starts) & (pos < ends)).astype(jnp.bfloat16)

    # counts[b, e] = multiplicity of row e in bag b.  bf16 0/1 inputs, f32
    # accumulation -> exact small integers, native MXU rate.
    counts = lax.dot_general(
        bag, onehot_ref[...], (((1,), (1,)), ((), ())),
        preferred_element_type=jnp.float32)                  # (B, E)

    # SUM pooling as one MXU matmul against the f32 weights.  HIGHEST
    # precision keeps FP32 parity with the PyTorch module (MXU not the
    # binding slot here, so the extra passes are ~free).
    pooled = jnp.dot(counts, w_ref[0],
                     preferred_element_type=jnp.float32,
                     precision=lax.Precision.HIGHEST)        # (B, D)

    # one dense, lane-aligned (B, D) store into the (B, T*D) output.
    o_ref[...] = pooled


def sparse_arch_forward(indices, offsets, weights, batch_size):
    """Equivalent of SparseArch.forward(indices, offsets) -> (B, T*D) float32."""
    T, E, D = weights.shape
    B = int(batch_size)
    assert D % 128 == 0, "lane-dense output path requires D % 128 == 0"

    L = int(indices.shape[0])
    L_pad = max(128, pl.cdiv(max(L, 1), 128) * 128)

    # Pad indices with -1 so padded positions match no embedding row
    # (all-zero one-hot column) -- robust even without the bag mask.
    idx = jnp.full((L_pad,), -1, jnp.int32)
    if L > 0:
        idx = idx.at[:L].set(indices.astype(jnp.int32))

    # Table-invariant one-hot, built ONCE (hoisted out of the per-table grid).
    onehot = (jnp.arange(E, dtype=jnp.int32)[:, None] == idx[None, :]
              ).astype(jnp.bfloat16)                          # (E, L_pad)

    offsets = offsets.astype(jnp.int32)
    starts = offsets[:-1].reshape(T, B, 1)
    ends = offsets[1:].reshape(T, B, 1)
    weights = weights.astype(jnp.float32)

    out = pl.pallas_call(
        _emb_bag_kernel,
        out_shape=jax.ShapeDtypeStruct((B, T * D), jnp.float32),
        grid_spec=pltpu.PrefetchScalarGridSpec(
            num_scalar_prefetch=0,
            grid=(T,),
            in_specs=[
                # per-table bag boundaries
                pl.BlockSpec((1, B, 1), lambda t: (t, 0, 0)),
                pl.BlockSpec((1, B, 1), lambda t: (t, 0, 0)),
                # resident, table-invariant one-hot (constant block index
                # -> DMA'd once for the whole grid)
                pl.BlockSpec((E, L_pad), lambda t: (0, 0)),
                # this table's weights (toy E fits VMEM; see HBM-gather TODO)
                pl.BlockSpec((1, E, D), lambda t: (t, 0, 0)),
            ],
            # lane-dense output: each table writes its own (B, D) column block
            # of the (B, T*D) result -- no wrapper transpose needed.
            out_specs=pl.BlockSpec((B, D), lambda t: (0, t)),
        ),
        compiler_params=pltpu.CompilerParams(
            # disjoint output blocks per table; safe under megacore sharding
            # because nothing persists across grid steps (one-hot is an input).
            dimension_semantics=("parallel",)),
    )(starts, ends, onehot, weights)

    return out


def _reference_forward(indices, offsets, weights, B):
    """Pure-numpy reference of SplitTableBatchedEmbeddingBagsCodegen SUM pooling."""
    T, E, D = weights.shape
    out = np.zeros((B, T * D), np.float32)
    for t in range(T):
        for b in range(B):
            s, e = int(offsets[t * B + b]), int(offsets[t * B + b + 1])
            for i in range(s, e):
                out[b, t * D:(t + 1) * D] += weights[t, int(indices[i])]
    return out


if __name__ == "__main__":
    # Small shapes consistent with the module: num_tables tables of
    # (num_rows x emb_dim), batch of B bags per table.  emb_dim=128 so the
    # lane-dense output path is exercised.
    emb_dim = 128
    num_tables = 2
    num_rows = 64
    B = 4

    key = jax.random.PRNGKey(0)
    k_w, k_len, k_idx = jax.random.split(key, 3)

    # Deterministic uniform init, mirroring init_embedding_weights_uniform.
    weights = jax.random.uniform(
        k_w, (num_tables, num_rows, emb_dim), dtype=jnp.float32,
        minval=-EMB_WEIGHT_UNIFORM_INIT_BOUND,
        maxval=+EMB_WEIGHT_UNIFORM_INIT_BOUND,
    )

    # Build synthetic bags: random length in [0, 5) per (table, batch) bag.
    lengths = np.asarray(
        jax.random.randint(k_len, (num_tables * B,), 0, 5), dtype=np.int64)
    offsets_np = np.concatenate([[0], np.cumsum(lengths)]).astype(np.int32)
    total = int(offsets_np[-1])
    indices_np = np.asarray(
        jax.random.randint(k_idx, (max(total, 1),), 0, num_rows),
        dtype=np.int32)[:total]

    indices = jnp.asarray(indices_np)
    offsets = jnp.asarray(offsets_np)

    out = sparse_arch_forward(indices, offsets, weights, B)
    out = jax.block_until_ready(out)

    ref = _reference_forward(indices_np, offsets_np, np.asarray(weights), B)
    assert out.shape == (B, num_tables * emb_dim)
    assert out.dtype == jnp.float32
    # Counts matmul is exact (0/1 bf16 inputs, f32 acc, integer results);
    # pooling matmul runs at HIGHEST precision -> near-f32 parity.
    np.testing.assert_allclose(np.asarray(out), ref, rtol=1e-5, atol=1e-7)

    print("KERNEL_OK")
</pallas_src>

<mosaic_0001>
module attributes {stable_mosaic.version = 11 : i64} {
  func.func @_emb_bag_kernel(%arg0: i32, %arg1: memref<1x4x1xi32, #tpu.memory_space<vmem>>, %arg2: memref<1x4x1xi32, #tpu.memory_space<vmem>>, %arg3: memref<64x128xbf16, #tpu.memory_space<vmem>>, %arg4: memref<1x64x128xf32, #tpu.memory_space<vmem>>, %arg5: memref<4x128xf32, #tpu.memory_space<vmem>>) attributes {dimension_semantics = [#tpu.dimension_semantics<parallel>], iteration_bounds = array<i64: 2>, scalar_prefetch = 0 : i64, scratch_operands = 0 : i64, tpu.core_type = #tpu.core_type<tc>, window_params = [{transform_indices = @transform_0, window_bounds = array<i64: 1, 4, 1>}, {transform_indices = @transform_1, window_bounds = array<i64: 1, 4, 1>}, {pipeline_mode = #tpu.pipeline_mode<synchronous>, transform_indices = @transform_2, window_bounds = array<i64: 64, 128>}, {transform_indices = @transform_3, window_bounds = array<i64: 1, 64, 128>}, {transform_indices = @transform_4, window_bounds = array<i64: 4, 128>}]} {
    %c0 = arith.constant 0 : index
    %c0_0 = arith.constant 0 : index
    %c0_1 = arith.constant 0 : index
    %0 = vector.load %arg1[%c0, %c0_0, %c0_1] : memref<1x4x1xi32, #tpu.memory_space<vmem>>, vector<1x4x1xi32>
    %1 = vector.shape_cast %0 : vector<1x4x1xi32> to vector<4x1xi32>
    %c0_2 = arith.constant 0 : index
    %c0_3 = arith.constant 0 : index
    %c0_4 = arith.constant 0 : index
    %2 = vector.load %arg2[%c0_2, %c0_3, %c0_4] : memref<1x4x1xi32, #tpu.memory_space<vmem>>, vector<1x4x1xi32>
    %3 = vector.shape_cast %2 : vector<1x4x1xi32> to vector<4x1xi32>
    %4 = tpu.iota {dimensions = array<i32: 1>} : vector<4x128xi32>
    %5 = vector.broadcast %1 : vector<4x1xi32> to vector<4x128xi32>
    %6 = arith.cmpi sge, %4, %5 : vector<4x128xi32>
    %7 = vector.broadcast %3 : vector<4x1xi32> to vector<4x128xi32>
    %8 = arith.cmpi slt, %4, %7 : vector<4x128xi32>
    %9 = arith.andi %6, %8 : vector<4x128xi1>
    %10 = arith.extui %9 : vector<4x128xi1> to vector<4x128xi32>
    %11 = arith.sitofp %10 : vector<4x128xi32> to vector<4x128xf32>
    %12 = arith.truncf %11 : vector<4x128xf32> to vector<4x128xbf16>
    %c0_5 = arith.constant 0 : index
    %c0_6 = arith.constant 0 : index
    %13 = vector.load %arg3[%c0_5, %c0_6] : memref<64x128xbf16, #tpu.memory_space<vmem>>, vector<64x128xbf16>
    %cst = arith.constant dense<0.000000e+00> : vector<4x64xf32>
    %14 = tpu.matmul %12, %13, %cst {dimension_numbers = #tpu.dot_dimension_numbers<[1], [1], [0], [0], [0, 0, 1, 0], [], []>} : vector<4x128xbf16>, vector<64x128xbf16>, vector<4x64xf32> -> vector<4x64xf32>
    %c0_7 = arith.constant 0 : index
    %c0_8 = arith.constant 0 : index
    %c0_9 = arith.constant 0 : index
    %15 = vector.load %arg4[%c0_7, %c0_8, %c0_9] : memref<1x64x128xf32, #tpu.memory_space<vmem>>, vector<1x64x128xf32>
    %16 = vector.shape_cast %15 : vector<1x64x128xf32> to vector<64x128xf32>
    %cst_10 = arith.constant dense<0.000000e+00> : vector<4x128xf32>
    %17 = tpu.matmul %14, %16, %cst_10 {dimension_numbers = #tpu.dot_dimension_numbers<[1], [0], [0], [1], [0, 0, 1, 1], [], []>, precision = #tpu.contract_precision<fp32>} : vector<4x64xf32>, vector<64x128xf32>, vector<4x128xf32> -> vector<4x128xf32>
    %c0_11 = arith.constant 0 : index
    %c0_12 = arith.constant 0 : index
    %18 = vector.load %arg5[%c0_11, %c0_12] : memref<4x128xf32, #tpu.memory_space<vmem>>, vector<4x128xf32>
    tpu.vector_store %arg5[%c0_11, %c0_12], %17 {strides = array<i32>} : memref<4x128xf32, #tpu.memory_space<vmem>>, vector<4x128xf32>,
    return
  }
  func.func @transform_0(%arg0: i32) -> (i32, i32, i32) {
    %c0_i32 = arith.constant 0 : i32
    %c0_i32_0 = arith.constant 0 : i32
    %c0_i32_1 = arith.constant 0 : i32
    return %arg0, %c0_i32, %c0_i32_0 : i32, i32, i32
  }
  func.func @transform_1(%arg0: i32) -> (i32, i32, i32) {
    %c0_i32 = arith.constant 0 : i32
    %c0_i32_0 = arith.constant 0 : i32
    %c0_i32_1 = arith.constant 0 : i32
    return %arg0, %c0_i32, %c0_i32_0 : i32, i32, i32
  }
  func.func @transform_2(%arg0: i32) -> (i32, i32) {
    %c0_i32 = arith.constant 0 : i32
    %c0_i32_0 = arith.constant 0 : i32
    %c0_i32_1 = arith.constant 0 : i32
    return %c0_i32, %c0_i32_0 : i32, i32
  }
  func.func @transform_3(%arg0: i32) -> (i32, i32, i32) {
    %c0_i32 = arith.constant 0 : i32
    %c0_i32_0 = arith.constant 0 : i32
    %c0_i32_1 = arith.constant 0 : i32
    return %arg0, %c0_i32, %c0_i32_0 : i32, i32, i32
  }
  func.func @transform_4(%arg0: i32) -> (i32, i32) {
    %c0_i32 = arith.constant 0 : i32
    %c0_i32_0 = arith.constant 0 : i32
    return %c0_i32, %arg0 : i32, i32
  }
}

</mosaic_0001>

<llo_original>
// kernel: tpu_custom_call.1
$region0: #{tpu_custom_call.1}
  #allocation0 [shape = 'u32[]', space=smem, size = 0x4, offset = 0x4, fixed_abs, tag = 'smem constant byte address 0x4 - core index']
  #allocation1 [shape = 'u32[144,128]{1,0:T(1,128)}', space=vmem, size = 0x12000, scoped, tag = 'internal scratch']
  %s0 = inlined_call_operand.vmem [shape: s32[2,4,1], index: 0, kind: input, shape index: {}]
  %s1 = inlined_call_operand.vmem [shape: s32[2,4,1], index: 1, kind: input, shape index: {}]
  %s2 = inlined_call_operand.hbm [shape: bf16[64,128], index: 2, kind: input, shape index: {}]
  %s3 = inlined_call_operand.hbm [shape: f32[2,64,128], index: 3, kind: input, shape index: {}]
  %s4 = inlined_call_operand.hbm [shape: f32[4,256], index: 4, kind: output, shape index: {}]
  %s5 = sld [smem:[#allocation0]]
  $region57: #{tpu_custom_call.1} parent=0
    _
  %s7 = ssub.s32 1, %s5
  %s8 = scalar_select 0, %s7, %s5
  $region1: #{tpu_custom_call.1} parent=0
    #allocation2 [shape = 'u8[16384]{0}', space=vmem, size = 0x4000, scoped, tag = 'input window, operand 2, single buffered']
    #allocation3 [shape = 's32[2]{0}', space=sflag, size = 0x8, scoped, tag = 'scoped memory for tpu_custom_call.1']
    #allocation4 [shape = 's32[2]{0}', space=sflag, size = 0x8, scoped, tag = 'scoped memory for tpu_custom_call.1']
    #allocation5 [shape = 'u8[65536]{0}', space=vmem, size = 0x10000, scoped, tag = 'input window, operand 3']
    #allocation6 [shape = 's32[2]{0}', space=sflag, size = 0x8, scoped, tag = 'scoped memory for tpu_custom_call.1']
    #allocation7 [shape = 'u8[4096]{0}', space=vmem, size = 0x1000, scoped, tag = 'output window, operand 0']
    %9 = vsyncpa [#allocation3], 0
    %10 = vsyncpa [#allocation6], 0
    %s11 = scalar_lea.sflag [#allocation6], 1
    %12 = vsyncpa %s11, 0
    %13 = vsyncpa [#allocation4], 0
    %s14 = scalar_lea.sflag [#allocation4], 1
    %15 = vsyncpa %s14, 0
    loop: start=0, step=1, limit=4
    $region2: #{tpu_custom_call.1} parent=1 // loop_pre_header
      _
    $region3: #{tpu_custom_call.1} parent=1 // loop_header
      %s17 = sphi 0, %s21
      %p18 = scmp.ge.s32.totalorder %s17, 4
      %s27 = sphi 0, %s29
      %s30 = sphi 0, %s27
      %s31 = sphi 0, %s30
      %s47 = sphi 0, %s31
      %s53 = sphi 0, %s55
      %s56 = sphi 0, %s53
      %s57 = sphi 0, %s56
      %s73 = sphi 0, %s57
      %s77 = sphi 0, %s77
      %s79 = sphi 0, %s77
      %s80 = sphi 0, %s79
      %s94 = sphi 0, %s80
      %s100 = sphi 0, %s102
      %s103 = sphi 0, %s100
      %s104 = sphi 0, %s103
      %s120 = sphi 0, %s104
      %s126 = sphi 0, %s128
      %s129 = sphi 0, %s126
      %s130 = sphi 0, %s129
      %s146 = sphi 0, %s130
    $region4: #{tpu_custom_call.1} parent=1 // loop_header_branch
      %20 = sbr.rel (%p18) target = $region8
    $region5: #{tpu_custom_call.1} parent=1 // loop_body
      %s22 = ssub.s32 %s17, 1
      %s23 = ssub.s32 %s17, 2
      %s24 = sadd.s32 %s17, 1
      %s25 = ssub.s32 %s17, %s24
      %p26 = scmp.eq.s32.totalorder %s25, 0
      %s28 = sadd.s32 %s27, 1
      %s29 = scalar_select %p26, %s27, %s28
      %p32 = pneg %p26
      %p33 = scmp.eq.s32.totalorder %s17, 1
      %p34 = por %p32, %p33
      %p35 = scmp.ne.s32.totalorder %s27, %s30
      %p36 = scmp.eq.s32.totalorder %s17, 0
      %p37 = por %p35, %p36
      %p38 = scmp.ne.s32.totalorder %s27, %s30
      %p39 = scmp.eq.s32.totalorder %s22, 1
      %p40 = por %p38, %p39
      %p41 = scmp.ne.s32.totalorder %s30, %s31
      %p42 = scmp.eq.s32.totalorder %s22, 0
      %p43 = por %p41, %p42
      %p44 = scmp.ne.s32.totalorder %s30, %s31
      %p45 = scmp.eq.s32.totalorder %s23, 1
      %p46 = por %p44, %p45
      %p48 = scmp.ne.s32.totalorder %s31, %s47
      %p49 = scmp.eq.s32.totalorder %s23, 0
      %p50 = por %p48, %p49
      %s51 = ssub.s32 %s17, %s24
      %p52 = scmp.eq.s32.totalorder %s51, 0
      %s54 = sadd.s32 %s53, 1
      %s55 = scalar_select %p52, %s53, %s54
      %p58 = pneg %p52
      %p59 = scmp.eq.s32.totalorder %s17, 1
      %p60 = por %p58, %p59
      %p61 = scmp.ne.s32.totalorder %s53, %s56
      %p62 = scmp.eq.s32.totalorder %s17, 0
      %p63 = por %p61, %p62
      %p64 = scmp.ne.s32.totalorder %s53, %s56
      %p65 = scmp.eq.s32.totalorder %s22, 1
      %p66 = por %p64, %p65
      %p67 = scmp.ne.s32.totalorder %s56, %s57
      %p68 = scmp.eq.s32.totalorder %s22, 0
      %p69 = por %p67, %p68
      %p70 = scmp.ne.s32.totalorder %s56, %s57
      %p71 = scmp.eq.s32.totalorder %s23, 1
      %p72 = por %p70, %p71
      %p74 = scmp.ne.s32.totalorder %s57, %s73
      %p75 = scmp.eq.s32.totalorder %s23, 0
      %p76 = por %p74, %p75
      %s78 = sadd.s32 %s77, 1
      %p81 = scmp.eq.s32.totalorder %s17, 1
      %p82 = scmp.ne.s32.totalorder %s77, %s79
      %p83 = scmp.eq.s32.totalorder %s17, 0
      %p84 = por %p82, %p83
      %p85 = scmp.ne.s32.totalorder %s77, %s79
      %p86 = scmp.eq.s32.totalorder %s22, 1
      %p87 = por %p85, %p86
      %p88 = scmp.ne.s32.totalorder %s79, %s80
      %p89 = scmp.eq.s32.totalorder %s22, 0
      %p90 = por %p88, %p89
      %p91 = scmp.ne.s32.totalorder %s79, %s80
      %p92 = scmp.eq.s32.totalorder %s23, 1
      %p93 = por %p91, %p92
      %p95 = scmp.ne.s32.totalorder %s80, %s94
      %p96 = scmp.eq.s32.totalorder %s23, 0
      %p97 = por %p95, %p96
      %s98 = ssub.s32 %s17, %s24
      %p99 = scmp.eq.s32.totalorder %s98, 0
      %s101 = sadd.s32 %s100, 1
      %s102 = scalar_select %p99, %s100, %s101
      %p105 = pneg %p99
      %p106 = scmp.eq.s32.totalorder %s17, 1
      %p107 = por %p105, %p106
      %p108 = scmp.ne.s32.totalorder %s100, %s103
      %p109 = scmp.eq.s32.totalorder %s17, 0
      %p110 = por %p108, %p109
      %p111 = scmp.ne.s32.totalorder %s100, %s103
      %p112 = scmp.eq.s32.totalorder %s22, 1
      %p113 = por %p111, %p112
      %p114 = scmp.ne.s32.totalorder %s103, %s104
      %p115 = scmp.eq.s32.totalorder %s22, 0
      %p116 = por %p114, %p115
      %p117 = scmp.ne.s32.totalorder %s103, %s104
      %p118 = scmp.eq.s32.totalorder %s23, 1
      %p119 = por %p117, %p118
      %p121 = scmp.ne.s32.totalorder %s104, %s120
      %p122 = scmp.eq.s32.totalorder %s23, 0
      %p123 = por %p121, %p122
      %s124 = ssub.s32 %s17, %s24
      %p125 = scmp.eq.s32.totalorder %s124, 0
      %s127 = sadd.s32 %s126, 1
      %s128 = scalar_select %p125, %s126, %s127
      %p131 = pneg %p125
      %p132 = scmp.eq.s32.totalorder %s17, 1
      %p133 = por %p131, %p132
      %p134 = scmp.ne.s32.totalorder %s126, %s129
      %p135 = scmp.eq.s32.totalorder %s17, 0
      %p136 = por %p134, %p135
      %p137 = scmp.ne.s32.totalorder %s126, %s129
      %p138 = scmp.eq.s32.totalorder %s22, 1
      %p139 = por %p137, %p138
      %p140 = scmp.ne.s32.totalorder %s129, %s130
      %p141 = scmp.eq.s32.totalorder %s22, 0
      %p142 = por %p140, %p141
      %p143 = scmp.ne.s32.totalorder %s129, %s130
      %p144 = scmp.eq.s32.totalorder %s23, 1
      %p145 = por %p143, %p144
      %p147 = scmp.ne.s32.totalorder %s130, %s146
      %p148 = scmp.eq.s32.totalorder %s23, 0
      %p149 = por %p147, %p148
      %p150 = scmp.le.s32.totalorder 1, %s17
      %p151 = scmp.lt.s32.totalorder %s17, 3
      %p152 = pnand %p150, %p151
      %p153 = pneg %p152
      // Predicated region
      $region9: #{tpu_custom_call.1} parent=5 // pred_check
        _
      $region10: #{tpu_custom_call.1} parent=5 // pred_check_branch
        %155 = sbr.rel (%p152) target = $region12
      $region11: #{tpu_custom_call.1} parent=5 // pred_region
        %s156 = ssub.s32 %s17, 1
        // Predicated region
        $region13: #{tpu_custom_call.1} parent=11 // pred_check
          %p157 = pneg %p90
        $region14: #{tpu_custom_call.1} parent=11 // pred_check_branch
          %159 = sbr.rel (%p157) target = $region16
        $region15: #{tpu_custom_call.1} parent=11 // pred_region
          %s161 = ssub.s32 512, 512
          %162 = vsyncadd [#allocation3], %s161
          %s163 = sshll.u32 [#allocation2], 4
          %s164 = int_to_ptr.vmem [resolvable:$true] %s163
          %169 = dma.hbm_to_vmem [thread:$0]  %s2, 512, %s164, [#allocation3], 64, 64, 4
        $region16: #{tpu_custom_call.1} parent=11 // pred_fallthru
          _
      $region12: #{tpu_custom_call.1} parent=5 // pred_fallthru
        _
      %p170 = scmp.lt.s32.totalorder %s17, 2
      // Predicated region
      $region17: #{tpu_custom_call.1} parent=5 // pred_check
        %p171 = pneg %p170
      $region18: #{tpu_custom_call.1} parent=5 // pred_check_branch
        %173 = sbr.rel (%p171) target = $region20
      $region19: #{tpu_custom_call.1} parent=5 // pred_region
        // Predicated region
        $region21: #{tpu_custom_call.1} parent=19 // pred_check
          %p174 = pneg %p37
        $region22: #{tpu_custom_call.1} parent=19 // pred_check_branch
          %176 = sbr.rel (%p174) target = $region24
        $region23: #{tpu_custom_call.1} parent=19 // pred_region
          %p177 = scmp.lt.s32.totalorder %s17, 1
          %s178 = scalar_select %p177, %s17, 1
          %s179 = smul.addr %s178, 4
          %s180 = scalar_lea.vmem %s0, %s179
        $region24: #{tpu_custom_call.1} parent=19 // pred_fallthru
          _
        // Predicated region
        $region25: #{tpu_custom_call.1} parent=19 // pred_check
          %p181 = pneg %p63
        $region26: #{tpu_custom_call.1} parent=19 // pred_check_branch
          %183 = sbr.rel (%p181) target = $region28
        $region27: #{tpu_custom_call.1} parent=19 // pred_region
          %p184 = scmp.lt.s32.totalorder %s17, 1
          %s185 = scalar_select %p184, %s17, 1
          %s186 = smul.addr %s185, 4
          %s187 = scalar_lea.vmem %s1, %s186
        $region28: #{tpu_custom_call.1} parent=19 // pred_fallthru
          _
        // Predicated region
        $region29: #{tpu_custom_call.1} parent=19 // pred_check
          %p188 = pneg %p110
        $region30: #{tpu_custom_call.1} parent=19 // pred_check_branch
          %190 = sbr.rel (%p188) target = $region32
        $region31: #{tpu_custom_call.1} parent=19 // pred_region
          %s191 = sand.u32 %s100, 1
          %s192 = scalar_lea.sflag [#allocation6], %s191
          %s193 = sand.u32 %s100, 1
          %s194 = smul.addr %s193, 64
          %s195 = scalar_lea.vmem [#allocation5], %s194
          %s197 = ssub.s32 1024, 1024
          %198 = vsyncadd %s192, %s197
          %s199 = smul.addr %s17, 8
          %s200 = smul.addr %s199, 128
          %s201 = scalar_lea.hbm %s3, %s200
          %s202 = sshll.u32 %s195, 4
          %s203 = int_to_ptr.vmem [resolvable:$true] %s202
          %208 = dma.hbm_to_vmem [thread:$0]  %s201, 1024, %s203, %s192, 128, 128, 8
        $region32: #{tpu_custom_call.1} parent=19 // pred_fallthru
          _
      $region20: #{tpu_custom_call.1} parent=5 // pred_fallthru
        _
      %p209 = scmp.le.s32.totalorder 1, %s17
      %p210 = scmp.lt.s32.totalorder %s17, 3
      %p211 = pnand %p209, %p210
      %p212 = pneg %p211
      // Predicated region
      $region33: #{tpu_custom_call.1} parent=5 // pred_check
        _
      $region34: #{tpu_custom_call.1} parent=5 // pred_check_branch
        %214 = sbr.rel (%p211) target = $region36
      $region35: #{tpu_custom_call.1} parent=5 // pred_region
        %s215 = ssub.s32 %s17, 1
        // Predicated region
        $region37: #{tpu_custom_call.1} parent=35 // pred_check
          %p216 = pneg %p90
        $region38: #{tpu_custom_call.1} parent=35 // pred_check_branch
          %218 = sbr.rel (%p216) target = $region40
        $region39: #{tpu_custom_call.1} parent=35 // pred_region
          %219 = dma.done [#allocation3], 512
        $region40: #{tpu_custom_call.1} parent=35 // pred_fallthru
          _
        %s220 = sand.u32 %s103, 1
        %s221 = scalar_lea.sflag [#allocation6], %s220
        %s222 = sand.u32 %s103, 1
        %s223 = smul.addr %s222, 64
        %s224 = scalar_lea.vmem [#allocation5], %s223
        // Predicated region
        $region41: #{tpu_custom_call.1} parent=35 // pred_check
          %p225 = pneg %p116
        $region42: #{tpu_custom_call.1} parent=35 // pred_check_branch
          %227 = sbr.rel (%p225) target = $region44
        $region43: #{tpu_custom_call.1} parent=35 // pred_region
          %228 = dma.done %s221, 1024
        $region44: #{tpu_custom_call.1} parent=35 // pred_fallthru
          _
        %p229 = scmp.lt.s32.totalorder %s22, 1
        %s230 = scalar_select %p229, %s22, 1
        %s231 = smul.addr %s230, 4
        %s232 = scalar_lea.vmem %s0, %s231
        %p233 = pneg %p43
        %p234 = pneg %p40
        %p235 = scmp.lt.s32.totalorder %s22, 1
        %s236 = scalar_select %p235, %s22, 1
        %s237 = smul.addr %s236, 4
        %s238 = scalar_lea.vmem %s1, %s237
        %p239 = pneg %p69
        %p240 = pneg %p66
        %p241 = pneg %p90
        %p242 = pneg %p87
        %s243 = sand.u32 %s103, 1
        %s244 = scalar_lea.sflag [#allocation6], %s243
        %s245 = sand.u32 %s103, 1
        %s246 = smul.addr %s245, 64
        %s247 = scalar_lea.vmem [#allocation5], %s246
        %p248 = pneg %p116
        %p249 = pneg %p113
        %p250 = pneg %p142
        %p251 = pneg %p139
        %s252 = sand.u32 %s129, 1
        %s253 = scalar_lea.sflag [#allocation4], %s252
        %s254 = sand.u32 %s129, 1
        %s255 = smul.addr %s254, 4
        %s256 = scalar_lea.vmem [#allocation7], %s255
        %p257 = scmp.lt.s32.totalorder %s22, 1
        %s258 = scalar_select %p257, %s22, 1
        %s259 = smul.addr %s258, 4
        %s260 = scalar_lea.vmem %s0, %s259
        %p261 = scmp.lt.s32.totalorder %s22, 1
        %s262 = scalar_select %p261, %s22, 1
        %s263 = smul.addr %s262, 4
        %s264 = scalar_lea.vmem %s1, %s263
        %v266 = vld [vmem:[%s260] sm:$0xf]
        %v267 = vld [vmem:[%s264] sm:$0xf]
        %v268 = vlaneseq
        %v269 = vand.u32 %v268, 127
        %270 = vset.pattern.permute.xlu0 0
        %271 = vperm.xlu0 %270, %v266
        %v272 = vpop.permute.xlu0 %271
        %vm273 = vcmp.ge.s32.totalorder %v269, %v272
        %274 = vset.pattern.permute.xlu0 0
        %275 = vperm.xlu0 %274, %v267
        %v276 = vpop.permute.xlu0 %275
        %vm277 = vcmp.lt.s32.totalorder %v269, %v276
        %vm278 = vmand %vm273, %vm277
        %v279 = vsel %vm278, 1, 0
        %v280 = vcvt.s32.f32 %v279
        %v281 = vpack.c.bf16 %v280, %v280
        %v282 = vld [vmem:[#allocation2] sm:$0xf]
        %v283 = vld [vmem:[#allocation2 + $0x4] sm:$0xf]
        %v284 = vld [vmem:[#allocation2 + $0x8] sm:$0xf]
        %v285 = vld [vmem:[#allocation2 + $0xc] sm:$0xf]
        %v286 = vld [vmem:[#allocation2 + $0x10] sm:$0xf]
        %v287 = vld [vmem:[#allocation2 + $0x14] sm:$0xf]
        %v288 = vld [vmem:[#allocation2 + $0x18] sm:$0xf]
        %v289 = vld [vmem:[#allocation2 + $0x1c] sm:$0xf]
        %v298 = vunpack.c.l.b16 %v282
        %v299 = vunpack.c.l.b16 %v283
        %v300 = vunpack.c.l.b16 %v284
        %v301 = vunpack.c.l.b16 %v285
        %v302 = vunpack.c.l.b16 %v286
        %v303 = vunpack.c.l.b16 %v287
        %v304 = vunpack.c.l.b16 %v288
        %v305 = vunpack.c.l.b16 %v289
        %v306 = vpack.c.b16 %v299, %v298
        %v307 = vpack.c.b16 %v301, %v300
        %v308 = vpack.c.b16 %v303, %v302
        %v309 = vpack.c.b16 %v305, %v304
        %314 = vmatprep.subr.bf16.mxu0 0
        %315 = vmatpush1.bf16.xpose.msra.mxu0 0
        %316 = vmatprep.subr.bf16.mxu0 0
        %317 = vmatpush1.bf16.xpose.msra.mxu0 0
        %318 = vmatprep.subr.bf16.mxu0 0
        %319 = vmatpush1.bf16.xpose.msra.mxu0 0
        %320 = vmatprep.subr.bf16.mxu0 0
        %321 = vmatpush1.bf16.xpose.msra.mxu0 0
        %322 = vmatprep.subr.bf16.mxu0 0
        %323 = vmatpush1.bf16.xpose.msra.mxu0 %v309
        %324 = vmatprep.subr.bf16.mxu0 0
        %325 = vmatpush1.bf16.xpose.msra.mxu0 %v308
        %326 = vmatprep.subr.bf16.mxu0 0
        %327 = vmatpush1.bf16.xpose.msra.mxu0 %v307
        %328 = vmatprep.subr.bf16.mxu0 0
        %329 = vmatpush1.bf16.xpose.msra.mxu0 %v306
        %330 = vmatprep.subr.bf16.mxu0 0
        %331 = vmatpush2.bf16.xpose.msra.mxu0 0
        %332 = vmatprep.subr.bf16.mxu0 0
        %333 = vmatpush2.bf16.xpose.msra.mxu0 0
        %334 = vmatprep.subr.bf16.mxu0 0
        %335 = vmatpush2.bf16.xpose.msra.mxu0 0
        %336 = vmatprep.subr.bf16.mxu0 0
        %337 = vmatpush2.bf16.xpose.msra.mxu0 0
        %338 = vmatprep.subr.bf16.mxu0 0
        %339 = vmatpush2.bf16.xpose.msra.mxu0 0
        %340 = vmatprep.subr.bf16.mxu0 0
        %341 = vmatpush2.bf16.xpose.msra.mxu0 0
        %342 = vmatprep.subr.bf16.mxu0 0
        %343 = vmatpush2.bf16.xpose.msra.mxu0 0
        %344 = vmatprep.subr.bf16.mxu0 0
        %345 = vmatpush2.bf16.xpose.msra.mxu0 0
        %346 = vmatprep.mubr.bf16.mxu0 0
        %347 = vmatmul.mubr.bf16.gmra.mxu0 %v281
        %v348 = vpop.f32.mrf.mxu0
        %v349 = vadd.f32 0.0, %v348
        %v350 = vpop.f32.mrf.mxu0
        %v351 = vpop.f32.mrf.mxu0
        %v352 = vpop.f32.mrf.mxu0
        %353 = vdwg.mxu0
        %v354 = vld [vmem:[%s224] sm:$0xff]
        %v355 = vld [vmem:[%s224 + $0x8] sm:$0xff]
        %v356 = vld [vmem:[%s224 + $0x10] sm:$0xff]
        %v357 = vld [vmem:[%s224 + $0x18] sm:$0xff]
        %v358 = vld [vmem:[%s224 + $0x20] sm:$0xff]
        %v359 = vld [vmem:[%s224 + $0x28] sm:$0xff]
        %v360 = vld [vmem:[%s224 + $0x30] sm:$0xff]
        %v361 = vld [vmem:[%s224 + $0x38] sm:$0xff]
        %vm362 = vcmask 523264
        %v364 = vsel %vm362, %v349, 0
        %366 = vmatprep.subr.mxu0 0.0
        %367 = vmatpush1.msra.mxu0 0.0
        %368 = vmatprep.subr.mxu0 0.0
        %369 = vmatpush1.msra.mxu0 0.0
        %370 = vmatprep.subr.mxu0 0.0
        %371 = vmatpush1.msra.mxu0 0.0
        %372 = vmatprep.subr.mxu0 0.0
        %373 = vmatpush1.msra.mxu0 0.0
        %374 = vmatprep.subr.mxu0 0.0
        %375 = vmatpush1.msra.mxu0 0.0
        %376 = vmatprep.subr.mxu0 0.0
        %377 = vmatpush1.msra.mxu0 0.0
        %378 = vmatprep.subr.mxu0 0.0
        %379 = vmatpush1.msra.mxu0 0.0
        %380 = vmatprep.subr.mxu0 0.0
        %381 = vmatpush1.msra.mxu0 0.0
        %382 = vmatprep.subr.mxu0 0.0
        %v383 = vand.u32 %v361, 4294901760
        %384 = vmatpush1.msra.mxu0 %v383
        %385 = vmatprep.subr.mxu0 0.0
        %v386 = vand.u32 %v360, 4294901760
        %387 = vmatpush1.msra.mxu0 %v386
        %388 = vmatprep.subr.mxu0 0.0
        %v389 = vand.u32 %v359, 4294901760
        %390 = vmatpush1.msra.mxu0 %v389
        %391 = vmatprep.subr.mxu0 0.0
        %v392 = vand.u32 %v358, 4294901760
        %393 = vmatpush1.msra.mxu0 %v392
        %394 = vmatprep.subr.mxu0 0.0
        %v395 = vand.u32 %v357, 4294901760
        %396 = vmatpush1.msra.mxu0 %v395
        %397 = vmatprep.subr.mxu0 0.0
        %v398 = vand.u32 %v356, 4294901760
        %399 = vmatpush1.msra.mxu0 %v398
        %400 = vmatprep.subr.mxu0 0.0
        %v401 = vand.u32 %v355, 4294901760
        %402 = vmatpush1.msra.mxu0 %v401
        %403 = vmatprep.subr.mxu0 0.0
        %v404 = vand.u32 %v354, 4294901760
        %405 = vmatpush1.msra.mxu0 %v404
        %406 = vmatprep.subr.mxu0 0.0
        %407 = vmatpush2.msra.mxu0 0.0
        %408 = vmatprep.subr.mxu0 0.0
        %409 = vmatpush2.msra.mxu0 0.0
        %410 = vmatprep.subr.mxu0 0.0
        %411 = vmatpush2.msra.mxu0 0.0
        %412 = vmatprep.subr.mxu0 0.0
        %413 = vmatpush2.msra.mxu0 0.0
        %414 = vmatprep.subr.mxu0 0.0
        %415 = vmatpush2.msra.mxu0 0.0
        %416 = vmatprep.subr.mxu0 0.0
        %417 = vmatpush2.msra.mxu0 0.0
        %418 = vmatprep.subr.mxu0 0.0
        %419 = vmatpush2.msra.mxu0 0.0
        %420 = vmatprep.subr.mxu0 0.0
        %421 = vmatpush2.msra.mxu0 0.0
        %422 = vmatprep.subr.mxu0 0.0
        %423 = vmatpush2.msra.mxu0 0.0
        %424 = vmatprep.subr.mxu0 0.0
        %425 = vmatpush2.msra.mxu0 0.0
        %426 = vmatprep.subr.mxu0 0.0
        %427 = vmatpush2.msra.mxu0 0.0
        %428 = vmatprep.subr.mxu0 0.0
        %429 = vmatpush2.msra.mxu0 0.0
        %430 = vmatprep.subr.mxu0 0.0
        %431 = vmatpush2.msra.mxu0 0.0
        %432 = vmatprep.subr.mxu0 0.0
        %433 = vmatpush2.msra.mxu0 0.0
        %434 = vmatprep.subr.mxu0 0.0
        %435 = vmatpush2.msra.mxu0 0.0
        %436 = vmatprep.subr.mxu0 0.0
        %437 = vmatpush2.msra.mxu0 0.0
        %438 = vmatprep.mubr.f32.mxu0 0.0
        %v439 = vand.u32 %v364, 4294901760
        %v440 = vsub.f32 %v364, %v439
        %v441 = vand.u32 %v440, 4294901760
        %v442 = vsub.f32 %v440, %v441
        %v443 = vand.u32 %v442, 4294901760
        %444 = vmatmul.mubr.f32.gmra.mxu0 %v443
        %v445 = vpop.f32.mrf.mxu0
        %v446 = vadd.f32 0.0, %v445
        %v447 = vpop.f32.mrf.mxu0
        %448 = vdwg.mxu0
        %449 = vmatprep.subr.mxu0 0.0
        %450 = vmatpush1.msra.mxu0 0.0
        %451 = vmatprep.subr.mxu0 0.0
        %452 = vmatpush1.msra.mxu0 0.0
        %453 = vmatprep.subr.mxu0 0.0
        %454 = vmatpush1.msra.mxu0 0.0
        %455 = vmatprep.subr.mxu0 0.0
        %456 = vmatpush1.msra.mxu0 0.0
        %457 = vmatprep.subr.mxu0 0.0
        %458 = vmatpush1.msra.mxu0 0.0
        %459 = vmatprep.subr.mxu0 0.0
        %460 = vmatpush1.msra.mxu0 0.0
        %461 = vmatprep.subr.mxu0 0.0
        %462 = vmatpush1.msra.mxu0 0.0
        %463 = vmatprep.subr.mxu0 0.0
        %464 = vmatpush1.msra.mxu0 0.0
        %465 = vmatprep.subr.mxu0 0.0
        %v466 = vand.u32 %v361, 4294901760
        %v467 = vsub.f32 %v361, %v466
        %v468 = vand.u32 %v467, 4294901760
        %v469 = vsub.f32 %v467, %v468
        %v470 = vand.u32 %v469, 4294901760
        %471 = vmatpush1.msra.mxu0 %v470
        %472 = vmatprep.subr.mxu0 0.0
        %v473 = vand.u32 %v360, 4294901760
        %v474 = vsub.f32 %v360, %v473
        %v475 = vand.u32 %v474, 4294901760
        %v476 = vsub.f32 %v474, %v475
        %v477 = vand.u32 %v476, 4294901760
        %478 = vmatpush1.msra.mxu0 %v477
        %479 = vmatprep.subr.mxu0 0.0
        %v480 = vand.u32 %v359, 4294901760
        %v481 = vsub.f32 %v359, %v480
        %v482 = vand.u32 %v481, 4294901760
        %v483 = vsub.f32 %v481, %v482
        %v484 = vand.u32 %v483, 4294901760
        %485 = vmatpush1.msra.mxu0 %v484
        %486 = vmatprep.subr.mxu0 0.0
        %v487 = vand.u32 %v358, 4294901760
        %v488 = vsub.f32 %v358, %v487
        %v489 = vand.u32 %v488, 4294901760
        %v490 = vsub.f32 %v488, %v489
        %v491 = vand.u32 %v490, 4294901760
        %492 = vmatpush1.msra.mxu0 %v491
        %493 = vmatprep.subr.mxu0 0.0
        %v494 = vand.u32 %v357, 4294901760
        %v495 = vsub.f32 %v357, %v494
        %v496 = vand.u32 %v495, 4294901760
        %v497 = vsub.f32 %v495, %v496
        %v498 = vand.u32 %v497, 4294901760
        %499 = vmatpush1.msra.mxu0 %v498
        %500 = vmatprep.subr.mxu0 0.0
        %v501 = vand.u32 %v356, 4294901760
        %v502 = vsub.f32 %v356, %v501
        %v503 = vand.u32 %v502, 4294901760
        %v504 = vsub.f32 %v502, %v503
        %v505 = vand.u32 %v504, 4294901760
        %506 = vmatpush1.msra.mxu0 %v505
        %507 = vmatprep.subr.mxu0 0.0
        %v508 = vand.u32 %v355, 4294901760
        %v509 = vsub.f32 %v355, %v508
        %v510 = vand.u32 %v509, 4294901760
        %v511 = vsub.f32 %v509, %v510
        %v512 = vand.u32 %v511, 4294901760
        %513 = vmatpush1.msra.mxu0 %v512
        %514 = vmatprep.subr.mxu0 0.0
        %v515 = vand.u32 %v354, 4294901760
        %v516 = vsub.f32 %v354, %v515
        %v517 = vand.u32 %v516, 4294901760
        %v518 = vsub.f32 %v516, %v517
        %v519 = vand.u32 %v518, 4294901760
        %520 = vmatpush1.msra.mxu0 %v519
        %521 = vmatprep.subr.mxu0 0.0
        %522 = vmatpush2.msra.mxu0 0.0
        %523 = vmatprep.subr.mxu0 0.0
        %524 = vmatpush2.msra.mxu0 0.0
        %525 = vmatprep.subr.mxu0 0.0
        %526 = vmatpush2.msra.mxu0 0.0
        %527 = vmatprep.subr.mxu0 0.0
        %528 = vmatpush2.msra.mxu0 0.0
        %529 = vmatprep.subr.mxu0 0.0
        %530 = vmatpush2.msra.mxu0 0.0
        %531 = vmatprep.subr.mxu0 0.0
        %532 = vmatpush2.msra.mxu0 0.0
        %533 = vmatprep.subr.mxu0 0.0
        %534 = vmatpush2.msra.mxu0 0.0
        %535 = vmatprep.subr.mxu0 0.0
        %536 = vmatpush2.msra.mxu0 0.0
        %537 = vmatprep.subr.mxu0 0.0
        %538 = vmatpush2.msra.mxu0 0.0
        %539 = vmatprep.subr.mxu0 0.0
        %540 = vmatpush2.msra.mxu0 0.0
        %541 = vmatprep.subr.mxu0 0.0
        %542 = vmatpush2.msra.mxu0 0.0
        %543 = vmatprep.subr.mxu0 0.0
        %544 = vmatpush2.msra.mxu0 0.0
        %545 = vmatprep.subr.mxu0 0.0
        %546 = vmatpush2.msra.mxu0 0.0
        %547 = vmatprep.subr.mxu0 0.0
        %548 = vmatpush2.msra.mxu0 0.0
        %549 = vmatprep.subr.mxu0 0.0
        %550 = vmatpush2.msra.mxu0 0.0
        %551 = vmatprep.subr.mxu0 0.0
        %552 = vmatpush2.msra.mxu0 0.0
        %553 = vmatprep.mubr.f32.mxu0 0.0
        %v554 = vand.u32 %v364, 4294901760
        %555 = vmatmul.mubr.f32.gmra.mxu0 %v554
        %v556 = vpop.f32.mrf.mxu0
        %v557 = vadd.f32 %v446, %v556
        %v558 = vpop.f32.mrf.mxu0
        %559 = vdwg.mxu0
        %560 = vmatprep.subr.mxu0 0.0
        %561 = vmatpush1.msra.mxu0 0.0
        %562 = vmatprep.subr.mxu0 0.0
        %563 = vmatpush1.msra.mxu0 0.0
        %564 = vmatprep.subr.mxu0 0.0
        %565 = vmatpush1.msra.mxu0 0.0
        %566 = vmatprep.subr.mxu0 0.0
        %567 = vmatpush1.msra.mxu0 0.0
        %568 = vmatprep.subr.mxu0 0.0
        %569 = vmatpush1.msra.mxu0 0.0
        %570 = vmatprep.subr.mxu0 0.0
        %571 = vmatpush1.msra.mxu0 0.0
        %572 = vmatprep.subr.mxu0 0.0
        %573 = vmatpush1.msra.mxu0 0.0
        %574 = vmatprep.subr.mxu0 0.0
        %575 = vmatpush1.msra.mxu0 0.0
        %576 = vmatprep.subr.mxu0 0.0
        %v577 = vand.u32 %v361, 4294901760
        %v578 = vsub.f32 %v361, %v577
        %579 = vmatpush1.msra.mxu0 %v578
        %580 = vmatprep.subr.mxu0 0.0
        %v581 = vand.u32 %v360, 4294901760
        %v582 = vsub.f32 %v360, %v581
        %583 = vmatpush1.msra.mxu0 %v582
        %584 = vmatprep.subr.mxu0 0.0
        %v585 = vand.u32 %v359, 4294901760
        %v586 = vsub.f32 %v359, %v585
        %587 = vmatpush1.msra.mxu0 %v586
        %588 = vmatprep.subr.mxu0 0.0
        %v589 = vand.u32 %v358, 4294901760
        %v590 = vsub.f32 %v358, %v589
        %591 = vmatpush1.msra.mxu0 %v590
        %592 = vmatprep.subr.mxu0 0.0
        %v593 = vand.u32 %v357, 4294901760
        %v594 = vsub.f32 %v357, %v593
        %595 = vmatpush1.msra.mxu0 %v594
        %596 = vmatprep.subr.mxu0 0.0
        %v597 = vand.u32 %v356, 4294901760
        %v598 = vsub.f32 %v356, %v597
        %599 = vmatpush1.msra.mxu0 %v598
        %600 = vmatprep.subr.mxu0 0.0
        %v601 = vand.u32 %v355, 4294901760
        %v602 = vsub.f32 %v355, %v601
        %603 = vmatpush1.msra.mxu0 %v602
        %604 = vmatprep.subr.mxu0 0.0
        %v605 = vand.u32 %v354, 4294901760
        %v606 = vsub.f32 %v354, %v605
        %607 = vmatpush1.msra.mxu0 %v606
        %608 = vmatprep.subr.mxu0 0.0
        %609 = vmatpush2.msra.mxu0 0.0
        %610 = vmatprep.subr.mxu0 0.0
        %611 = vmatpush2.msra.mxu0 0.0
        %612 = vmatprep.subr.mxu0 0.0
        %613 = vmatpush2.msra.mxu0 0.0
        %614 = vmatprep.subr.mxu0 0.0
        %615 = vmatpush2.msra.mxu0 0.0
        %616 = vmatprep.subr.mxu0 0.0
        %617 = vmatpush2.msra.mxu0 0.0
        %618 = vmatprep.subr.mxu0 0.0
        %619 = vmatpush2.msra.mxu0 0.0
        %620 = vmatprep.subr.mxu0 0.0
        %621 = vmatpush2.msra.mxu0 0.0
        %622 = vmatprep.subr.mxu0 0.0
        %623 = vmatpush2.msra.mxu0 0.0
        %624 = vmatprep.subr.mxu0 0.0
        %625 = vmatpush2.msra.mxu0 0.0
        %626 = vmatprep.subr.mxu0 0.0
        %627 = vmatpush2.msra.mxu0 0.0
        %628 = vmatprep.subr.mxu0 0.0
        %629 = vmatpush2.msra.mxu0 0.0
        %630 = vmatprep.subr.mxu0 0.0
        %631 = vmatpush2.msra.mxu0 0.0
        %632 = vmatprep.subr.mxu0 0.0
        %633 = vmatpush2.msra.mxu0 0.0
        %634 = vmatprep.subr.mxu0 0.0
        %635 = vmatpush2.msra.mxu0 0.0
        %636 = vmatprep.subr.mxu0 0.0
        %637 = vmatpush2.msra.mxu0 0.0
        %638 = vmatprep.subr.mxu0 0.0
        %639 = vmatpush2.msra.mxu0 0.0
        %640 = vmatprep.mubr.f32.mxu0 0.0
        %v641 = vand.u32 %v364, 4294901760
        %v642 = vsub.f32 %v364, %v641
        %643 = vmatmul.mubr.f32.gmra.mxu0 %v642
        %v644 = vpop.f32.mrf.mxu0
        %v645 = vadd.f32 %v557, %v644
        %v646 = vpop.f32.mrf.mxu0
        %647 = vdwg.mxu0
        %648 = vmatprep.subr.mxu0 0.0
        %649 = vmatpush1.msra.mxu0 0.0
        %650 = vmatprep.subr.mxu0 0.0
        %651 = vmatpush1.msra.mxu0 0.0
        %652 = vmatprep.subr.mxu0 0.0
        %653 = vmatpush1.msra.mxu0 0.0
        %654 = vmatprep.subr.mxu0 0.0
        %655 = vmatpush1.msra.mxu0 0.0
        %656 = vmatprep.subr.mxu0 0.0
        %657 = vmatpush1.msra.mxu0 0.0
        %658 = vmatprep.subr.mxu0 0.0
        %659 = vmatpush1.msra.mxu0 0.0
        %660 = vmatprep.subr.mxu0 0.0
        %661 = vmatpush1.msra.mxu0 0.0
        %662 = vmatprep.subr.mxu0 0.0
        %663 = vmatpush1.msra.mxu0 0.0
        %664 = vmatprep.subr.mxu0 0.0
        %v665 = vand.u32 %v361, 4294901760
        %666 = vmatpush1.msra.mxu0 %v665
        %667 = vmatprep.subr.mxu0 0.0
        %v668 = vand.u32 %v360, 4294901760
        %669 = vmatpush1.msra.mxu0 %v668
        %670 = vmatprep.subr.mxu0 0.0
        %v671 = vand.u32 %v359, 4294901760
        %672 = vmatpush1.msra.mxu0 %v671
        %673 = vmatprep.subr.mxu0 0.0
        %v674 = vand.u32 %v358, 4294901760
        %675 = vmatpush1.msra.mxu0 %v674
        %676 = vmatprep.subr.mxu0 0.0
        %v677 = vand.u32 %v357, 4294901760
        %678 = vmatpush1.msra.mxu0 %v677
        %679 = vmatprep.subr.mxu0 0.0
        %v680 = vand.u32 %v356, 4294901760
        %681 = vmatpush1.msra.mxu0 %v680
        %682 = vmatprep.subr.mxu0 0.0
        %v683 = vand.u32 %v355, 4294901760
        %684 = vmatpush1.msra.mxu0 %v683
        %685 = vmatprep.subr.mxu0 0.0
        %v686 = vand.u32 %v354, 4294901760
        %687 = vmatpush1.msra.mxu0 %v686
        %688 = vmatprep.subr.mxu0 0.0
        %689 = vmatpush2.msra.mxu0 0.0
        %690 = vmatprep.subr.mxu0 0.0
        %691 = vmatpush2.msra.mxu0 0.0
        %692 = vmatprep.subr.mxu0 0.0
        %693 = vmatpush2.msra.mxu0 0.0
        %694 = vmatprep.subr.mxu0 0.0
        %695 = vmatpush2.msra.mxu0 0.0
        %696 = vmatprep.subr.mxu0 0.0
        %697 = vmatpush2.msra.mxu0 0.0
        %698 = vmatprep.subr.mxu0 0.0
        %699 = vmatpush2.msra.mxu0 0.0
        %700 = vmatprep.subr.mxu0 0.0
        %701 = vmatpush2.msra.mxu0 0.0
        %702 = vmatprep.subr.mxu0 0.0
        %703 = vmatpush2.msra.mxu0 0.0
        %704 = vmatprep.subr.mxu0 0.0
        %705 = vmatpush2.msra.mxu0 0.0
        %706 = vmatprep.subr.mxu0 0.0
        %707 = vmatpush2.msra.mxu0 0.0
        %708 = vmatprep.subr.mxu0 0.0
        %709 = vmatpush2.msra.mxu0 0.0
        %710 = vmatprep.subr.mxu0 0.0
        %711 = vmatpush2.msra.mxu0 0.0
        %712 = vmatprep.subr.mxu0 0.0
        %713 = vmatpush2.msra.mxu0 0.0
        %714 = vmatprep.subr.mxu0 0.0
        %715 = vmatpush2.msra.mxu0 0.0
        %716 = vmatprep.subr.mxu0 0.0
        %717 = vmatpush2.msra.mxu0 0.0
        %718 = vmatprep.subr.mxu0 0.0
        %719 = vmatpush2.msra.mxu0 0.0
        %720 = vmatprep.mubr.f32.mxu0 0.0
        %v721 = vand.u32 %v364, 4294901760
        %v722 = vsub.f32 %v364, %v721
        %v723 = vand.u32 %v722, 4294901760
        %724 = vmatmul.mubr.f32.gmra.mxu0 %v723
        %v725 = vpop.f32.mrf.mxu0
        %v726 = vadd.f32 %v645, %v725
        %v727 = vpop.f32.mrf.mxu0
        %728 = vdwg.mxu0
        %729 = vmatprep.subr.mxu0 0.0
        %730 = vmatpush1.msra.mxu0 0.0
        %731 = vmatprep.subr.mxu0 0.0
        %732 = vmatpush1.msra.mxu0 0.0
        %733 = vmatprep.subr.mxu0 0.0
        %734 = vmatpush1.msra.mxu0 0.0
        %735 = vmatprep.subr.mxu0 0.0
        %736 = vmatpush1.msra.mxu0 0.0
        %737 = vmatprep.subr.mxu0 0.0
        %738 = vmatpush1.msra.mxu0 0.0
        %739 = vmatprep.subr.mxu0 0.0
        %740 = vmatpush1.msra.mxu0 0.0
        %741 = vmatprep.subr.mxu0 0.0
        %742 = vmatpush1.msra.mxu0 0.0
        %743 = vmatprep.subr.mxu0 0.0
        %744 = vmatpush1.msra.mxu0 0.0
        %745 = vmatprep.subr.mxu0 0.0
        %v746 = vand.u32 %v361, 4294901760
        %v747 = vsub.f32 %v361, %v746
        %v748 = vand.u32 %v747, 4294901760
        %749 = vmatpush1.msra.mxu0 %v748
        %750 = vmatprep.subr.mxu0 0.0
        %v751 = vand.u32 %v360, 4294901760
        %v752 = vsub.f32 %v360, %v751
        %v753 = vand.u32 %v752, 4294901760
        %754 = vmatpush1.msra.mxu0 %v753
        %755 = vmatprep.subr.mxu0 0.0
        %v756 = vand.u32 %v359, 4294901760
        %v757 = vsub.f32 %v359, %v756
        %v758 = vand.u32 %v757, 4294901760
        %759 = vmatpush1.msra.mxu0 %v758
        %760 = vmatprep.subr.mxu0 0.0
        %v761 = vand.u32 %v358, 4294901760
        %v762 = vsub.f32 %v358, %v761
        %v763 = vand.u32 %v762, 4294901760
        %764 = vmatpush1.msra.mxu0 %v763
        %765 = vmatprep.subr.mxu0 0.0
        %v766 = vand.u32 %v357, 4294901760
        %v767 = vsub.f32 %v357, %v766
        %v768 = vand.u32 %v767, 4294901760
        %769 = vmatpush1.msra.mxu0 %v768
        %770 = vmatprep.subr.mxu0 0.0
        %v771 = vand.u32 %v356, 4294901760
        %v772 = vsub.f32 %v356, %v771
        %v773 = vand.u32 %v772, 4294901760
        %774 = vmatpush1.msra.mxu0 %v773
        %775 = vmatprep.subr.mxu0 0.0
        %v776 = vand.u32 %v355, 4294901760
        %v777 = vsub.f32 %v355, %v776
        %v778 = vand.u32 %v777, 4294901760
        %779 = vmatpush1.msra.mxu0 %v778
        %780 = vmatprep.subr.mxu0 0.0
        %v781 = vand.u32 %v354, 4294901760
        %v782 = vsub.f32 %v354, %v781
        %v783 = vand.u32 %v782, 4294901760
        %784 = vmatpush1.msra.mxu0 %v783
        %785 = vmatprep.subr.mxu0 0.0
        %786 = vmatpush2.msra.mxu0 0.0
        %787 = vmatprep.subr.mxu0 0.0
        %788 = vmatpush2.msra.mxu0 0.0
        %789 = vmatprep.subr.mxu0 0.0
        %790 = vmatpush2.msra.mxu0 0.0
        %791 = vmatprep.subr.mxu0 0.0
        %792 = vmatpush2.msra.mxu0 0.0
        %793 = vmatprep.subr.mxu0 0.0
        %794 = vmatpush2.msra.mxu0 0.0
        %795 = vmatprep.subr.mxu0 0.0
        %796 = vmatpush2.msra.mxu0 0.0
        %797 = vmatprep.subr.mxu0 0.0
        %798 = vmatpush2.msra.mxu0 0.0
        %799 = vmatprep.subr.mxu0 0.0
        %800 = vmatpush2.msra.mxu0 0.0
        %801 = vmatprep.subr.mxu0 0.0
        %802 = vmatpush2.msra.mxu0 0.0
        %803 = vmatprep.subr.mxu0 0.0
        %804 = vmatpush2.msra.mxu0 0.0
        %805 = vmatprep.subr.mxu0 0.0
        %806 = vmatpush2.msra.mxu0 0.0
        %807 = vmatprep.subr.mxu0 0.0
        %808 = vmatpush2.msra.mxu0 0.0
        %809 = vmatprep.subr.mxu0 0.0
        %810 = vmatpush2.msra.mxu0 0.0
        %811 = vmatprep.subr.mxu0 0.0
        %812 = vmatpush2.msra.mxu0 0.0
        %813 = vmatprep.subr.mxu0 0.0
        %814 = vmatpush2.msra.mxu0 0.0
        %815 = vmatprep.subr.mxu0 0.0
        %816 = vmatpush2.msra.mxu0 0.0
        %817 = vmatprep.mubr.f32.mxu0 0.0
        %v818 = vand.u32 %v364, 4294901760
        %819 = vmatmul.mubr.f32.gmra.mxu0 %v818
        %v820 = vpop.f32.mrf.mxu0
        %v821 = vadd.f32 %v726, %v820
        %v822 = vpop.f32.mrf.mxu0
        %823 = vdwg.mxu0
        %824 = vmatprep.subr.mxu0 0.0
        %825 = vmatpush1.msra.mxu0 0.0
        %826 = vmatprep.subr.mxu0 0.0
        %827 = vmatpush1.msra.mxu0 0.0
        %828 = vmatprep.subr.mxu0 0.0
        %829 = vmatpush1.msra.mxu0 0.0
        %830 = vmatprep.subr.mxu0 0.0
        %831 = vmatpush1.msra.mxu0 0.0
        %832 = vmatprep.subr.mxu0 0.0
        %833 = vmatpush1.msra.mxu0 0.0
        %834 = vmatprep.subr.mxu0 0.0
        %835 = vmatpush1.msra.mxu0 0.0
        %836 = vmatprep.subr.mxu0 0.0
        %837 = vmatpush1.msra.mxu0 0.0
        %838 = vmatprep.subr.mxu0 0.0
        %839 = vmatpush1.msra.mxu0 0.0
        %840 = vmatprep.subr.mxu0 0.0
        %v841 = vand.u32 %v361, 4294901760
        %842 = vmatpush1.msra.mxu0 %v841
        %843 = vmatprep.subr.mxu0 0.0
        %v844 = vand.u32 %v360, 4294901760
        %845 = vmatpush1.msra.mxu0 %v844
        %846 = vmatprep.subr.mxu0 0.0
        %v847 = vand.u32 %v359, 4294901760
        %848 = vmatpush1.msra.mxu0 %v847
        %849 = vmatprep.subr.mxu0 0.0
        %v850 = vand.u32 %v358, 4294901760
        %851 = vmatpush1.msra.mxu0 %v850
        %852 = vmatprep.subr.mxu0 0.0
        %v853 = vand.u32 %v357, 4294901760
        %854 = vmatpush1.msra.mxu0 %v853
        %855 = vmatprep.subr.mxu0 0.0
        %v856 = vand.u32 %v356, 4294901760
        %857 = vmatpush1.msra.mxu0 %v856
        %858 = vmatprep.subr.mxu0 0.0
        %v859 = vand.u32 %v355, 4294901760
        %860 = vmatpush1.msra.mxu0 %v859
        %861 = vmatprep.subr.mxu0 0.0
        %v862 = vand.u32 %v354, 4294901760
        %863 = vmatpush1.msra.mxu0 %v862
        %864 = vmatprep.subr.mxu0 0.0
        %865 = vmatpush2.msra.mxu0 0.0
        %866 = vmatprep.subr.mxu0 0.0
        %867 = vmatpush2.msra.mxu0 0.0
        %868 = vmatprep.subr.mxu0 0.0
        %869 = vmatpush2.msra.mxu0 0.0
        %870 = vmatprep.subr.mxu0 0.0
        %871 = vmatpush2.msra.mxu0 0.0
        %872 = vmatprep.subr.mxu0 0.0
        %873 = vmatpush2.msra.mxu0 0.0
        %874 = vmatprep.subr.mxu0 0.0
        %875 = vmatpush2.msra.mxu0 0.0
        %876 = vmatprep.subr.mxu0 0.0
        %877 = vmatpush2.msra.mxu0 0.0
        %878 = vmatprep.subr.mxu0 0.0
        %879 = vmatpush2.msra.mxu0 0.0
        %880 = vmatprep.subr.mxu0 0.0
        %881 = vmatpush2.msra.mxu0 0.0
        %882 = vmatprep.subr.mxu0 0.0
        %883 = vmatpush2.msra.mxu0 0.0
        %884 = vmatprep.subr.mxu0 0.0
        %885 = vmatpush2.msra.mxu0 0.0
        %886 = vmatprep.subr.mxu0 0.0
        %887 = vmatpush2.msra.mxu0 0.0
        %888 = vmatprep.subr.mxu0 0.0
        %889 = vmatpush2.msra.mxu0 0.0
        %890 = vmatprep.subr.mxu0 0.0
        %891 = vmatpush2.msra.mxu0 0.0
        %892 = vmatprep.subr.mxu0 0.0
        %893 = vmatpush2.msra.mxu0 0.0
        %894 = vmatprep.subr.mxu0 0.0
        %895 = vmatpush2.msra.mxu0 0.0
        %896 = vmatprep.mubr.f32.mxu0 0.0
        %v897 = vand.u32 %v364, 4294901760
        %898 = vmatmul.mubr.f32.gmra.mxu0 %v897
        %v899 = vpop.f32.mrf.mxu0
        %v900 = vadd.f32 %v821, %v899
        %v901 = vpop.f32.mrf.mxu0
        %902 = vdwg.mxu0
        %903 = vst [vmem:[%s256] sm:$0xf] %v900
        %s904 = sand.u32 %s129, 1
        %s905 = scalar_lea.sflag [#allocation4], %s904
        %s906 = sand.u32 %s129, 1
        %s907 = smul.addr %s906, 4
        %s908 = scalar_lea.vmem [#allocation7], %s907
        // Predicated region
        $region45: #{tpu_custom_call.1} parent=35 // pred_check
          %p909 = pneg %p139
        $region46: #{tpu_custom_call.1} parent=35 // pred_check_branch
          %911 = sbr.rel (%p909) target = $region48
        $region47: #{tpu_custom_call.1} parent=35 // pred_region
          %s913 = ssub.s32 64, 64
          %914 = vsyncadd %s905, %s913
          %s915 = smul.addr %s22, 64
          %s916 = scalar_lea.hbm %s4, %s915
          %s918 = sshll.u32 %s908, 4
          %s919 = int_to_ptr.vmem [resolvable:$true] %s918
          %921 = dma.vmem_to_hbm [thread:$0]  %s919, 64, %s916, %s905
        $region48: #{tpu_custom_call.1} parent=35 // pred_fallthru
          _
      $region36: #{tpu_custom_call.1} parent=5 // pred_fallthru
        _
      %p922 = scmp.le.s32.totalorder 2, %s17
      // Predicated region
      $region49: #{tpu_custom_call.1} parent=5 // pred_check
        %p923 = pneg %p922
      $region50: #{tpu_custom_call.1} parent=5 // pred_check_branch
        %925 = sbr.rel (%p923) target = $region52
      $region51: #{tpu_custom_call.1} parent=5 // pred_region
        %s926 = ssub.s32 %s17, 2
        // Predicated region
        $region53: #{tpu_custom_call.1} parent=51 // pred_check
          %p927 = pneg %p145
        $region54: #{tpu_custom_call.1} parent=51 // pred_check_branch
          %929 = sbr.rel (%p927) target = $region56
        $region55: #{tpu_custom_call.1} parent=51 // pred_region
          %s930 = sand.u32 %s130, 1
          %s931 = scalar_lea.sflag [#allocation4], %s930
          %s932 = sand.u32 %s130, 1
          %s933 = smul.addr %s932, 4
          %s934 = scalar_lea.vmem [#allocation7], %s933
          %935 = dma.done %s931, 64
        $region56: #{tpu_custom_call.1} parent=51 // pred_fallthru
          _
      $region52: #{tpu_custom_call.1} parent=5 // pred_fallthru
        _
    $region6: #{tpu_custom_call.1} parent=1 // loop_footer
      %s21 = sadd.s32 1, %s17
    $region7: #{tpu_custom_call.1} parent=1 // loop_footer_branch
      %16 = sbr.rel target = $region3
    $region8: #{tpu_custom_call.1} parent=1 // loop_exit
      _
    %936 = vsyncpa [#allocation3], 1
    %s937 = scalar_lea.sflag [#allocation3], 1
    %938 = vsyncpa %s937, 1
    %939 = vsyncpa [#allocation6], 1
    %s940 = scalar_lea.sflag [#allocation6], 1
    %941 = vsyncpa %s940, 1
    %942 = vsyncpa [#allocation4], 1
    %s943 = scalar_lea.sflag [#allocation4], 1
    %944 = vsyncpa %s943, 1

</llo_original>
